<compile_context>
chip_gen: v6e
topology: v6e:2x2x1
jax: 0.10.0
libtpu: 0.0.40
codegen_flags: <defaults>
</compile_context>

<pallas_src>
import jax
import jax.numpy as jnp
from jax.experimental import pallas as pl
from jax.experimental.pallas import tpu as pltpu


BN_EPS = 1e-5          # nn.BatchNorm1d default eps
NORM_EPS = 1e-12       # F.normalize default eps


def projection_kernel(x_ref, w1_ref, gb_ref, w2_ref, o_ref):
    step = pl.program_id(0)

    @pl.when(step == 0)
    def _init():
        o_ref[...] = jnp.zeros_like(o_ref)

    # ---- Linear 1 for this hidden tile (bf16 MXU operands, f32 accumulate).
    # The Linear-1 bias is intentionally omitted: training-mode BatchNorm
    # subtracts the batch mean, which cancels any per-feature constant exactly.
    h = jnp.dot(x_ref[...], w1_ref[...], preferred_element_type=jnp.float32)

    # ---- BatchNorm1d (training mode, biased batch stats over dim 0), two-pass
    # (centered) variance for robustness when |mean| >> std, fused with ReLU.
    inv_b = 1.0 / h.shape[0]
    mean = jnp.sum(h, axis=0, keepdims=True) * inv_b
    centered = h - mean
    var = jnp.sum(centered * centered, axis=0, keepdims=True) * inv_b
    scale = gb_ref[0:1, :] * jax.lax.rsqrt(var + BN_EPS)   # row 0 = gamma
    h = jnp.maximum(centered * scale + gb_ref[1:2, :], 0.0)  # row 1 = beta

    # ---- Linear 2 (no bias): accumulate the partial product directly into the
    # resident output block (constant index map across the H axis).
    o_ref[...] += jnp.dot(h.astype(w2_ref.dtype), w2_ref[...],
                          preferred_element_type=jnp.float32)

    # ---- finalize: F.normalize(z, dim=1) via one rsqrt on the squared norm.
    @pl.when(step == pl.num_programs(0) - 1)
    def _finalize():
        z = o_ref[...]
        sum_sq = jnp.sum(z * z, axis=1, keepdims=True)
        inv = jax.lax.rsqrt(jnp.maximum(sum_sq, NORM_EPS * NORM_EPS))
        o_ref[...] = z * inv


def _round_up(x, m):
    return ((x + m - 1) // m) * m


def _vmem_budget_bytes():
    """Generation-aware usable-VMEM budget with headroom.

    128 MiB parts (v5e/v6e) -> ~100 MiB budget; 64 MiB parts (v7x) -> ~40 MiB,
    keeping weight double/triple-buffering intact.
    """
    try:
        cap = int(pltpu.get_tpu_info().vmem_capacity_bytes)
    except Exception:
        cap = 64 << 20  # conservative default (v7x-sized VMEM)
    return max(min(cap - (24 << 20), 100 << 20), 16 << 20)


def prepare_params(w1, b1, gamma, beta, w2, *, tile_h=None):
    """One-time parameter preparation (transpose / pad / cast).  Call once.

    Returns a kernel-friendly layout:
      w1_t: (D_in, H_pad)       bf16
      w2_t: (H_pad, D_out_pad)  bf16   (padded rows/cols are zero)
      gb:   (2, H_pad)          f32    row 0 = gamma, row 1 = beta
    b1 is dropped: training-mode BN subtracts the batch mean, which cancels a
    per-feature constant exactly.  (If eval-mode BN with running stats is ever
    needed, fold b1 into the BN shift instead.)
    """
    hidden, d_in = w1.shape
    d_out = w2.shape[0]
    del b1  # exactly cancelled by the BN mean subtraction

    d_out_pad = _round_up(max(d_out, 128), 128)  # lane-dense output stores

    if tile_h is None:
        # Generation-aware: grow the hidden tile as large as half the VMEM
        # budget allows (fewer grid steps, larger contiguous weight DMAs),
        # capped at 1024, in MXU-friendly multiples of 256 (128 fallback).
        unit = 256 if hidden >= 256 else 128
        weight_budget = _vmem_budget_bytes() // 2
        bytes_per_h = 2 * ((d_in + d_out_pad) * 2 + 8 * 4)  # dbl-buffered W1+W2+gb
        tile_h = (weight_budget // bytes_per_h) // unit * unit
        tile_h = max(unit, min(int(tile_h), 1024, _round_up(hidden, unit)))

    hidden_pad = _round_up(hidden, tile_h)

    w1_t = jnp.zeros((d_in, hidden_pad), jnp.bfloat16)
    w1_t = w1_t.at[:, :hidden].set(jnp.transpose(w1).astype(jnp.bfloat16))
    w2_t = jnp.zeros((hidden_pad, d_out_pad), jnp.bfloat16)
    w2_t = w2_t.at[:hidden, :d_out].set(jnp.transpose(w2).astype(jnp.bfloat16))
    gb = jnp.zeros((2, hidden_pad), jnp.float32)
    gb = gb.at[0, :].set(1.0)                       # padded gamma columns = 1
    gb = gb.at[0, :hidden].set(gamma.astype(jnp.float32))
    gb = gb.at[1, :hidden].set(beta.astype(jnp.float32))

    # TODO(synk): narrow weight dtypes (int8 on v5e/v6e, fp8 on v7x) with the
    # dequant scales folded into gb / the final normalize would halve weight
    # HBM traffic for this weight-bandwidth-bound head.
    return dict(w1_t=w1_t, w2_t=w2_t, gb=gb, tile_h=int(tile_h), d_out=int(d_out))


def projection_forward(x, params):
    """x: (B, D_in) -> (B, D_out) f32, L2-normalized along dim=1.

    Note: at tiny B the kernel is weight-bandwidth bound (MXU M-rows mostly
    idle); batch multiple forward calls together when possible.
    """
    B, d_in = x.shape
    w1_t, w2_t, gb = params["w1_t"], params["w2_t"], params["gb"]
    tile_h, d_out = params["tile_h"], params["d_out"]
    assert w1_t.shape[0] == d_in
    hidden_pad, d_out_pad = w1_t.shape[1], w2_t.shape[1]
    n_h = hidden_pad // tile_h

    # With only a few H steps the default depth-2 pipeline cannot hide the
    # first/last weight-tile fetch; deepen buffering on just the streamed
    # weight operands (funded by the VMEM reclaimed from x / the accumulator).
    if n_h >= 3:
        w_pipe = dict(pipeline_mode=pl.Buffered(buffer_count=3))
        n_wbuf = 3
    else:
        w_pipe = {}
        n_wbuf = 2

    # Tile-derived VMEM limit with headroom, capped by the generation budget.
    est = (B * d_in * 2                         # x: single resident buffer
           + n_wbuf * d_in * tile_h * 2         # W1 tiles
           + n_wbuf * tile_h * d_out_pad * 2    # W2 tiles
           + 2 * 8 * tile_h * 4                 # gamma/beta tiles (8-sublane pad)
           + 2 * B * d_out_pad * 4)             # resident f32 output accumulator
    vmem_limit = int(min(max(2 * est, 4 << 20), _vmem_budget_bytes()))

    out = pl.pallas_call(
        projection_kernel,
        out_shape=jax.ShapeDtypeStruct((B, d_out_pad), jnp.float32),
        grid=(n_h,),
        in_specs=[
            # x: whole array resident in VMEM once (constant across H steps ->
            # no second buffer wasted on it).
            pl.BlockSpec(memory_space=pltpu.MemorySpace.VMEM),
            pl.BlockSpec((d_in, tile_h), lambda h: (0, h), **w_pipe),       # W1 tile
            pl.BlockSpec((2, tile_h), lambda h: (0, h)),                    # gamma/beta
            pl.BlockSpec((tile_h, d_out_pad), lambda h: (h, 0), **w_pipe),  # W2 tile
        ],
        # Constant index map across the (reduction) H axis: the output block is
        # the resident f32 accumulator; no separate scratch is needed.
        out_specs=pl.BlockSpec((B, d_out_pad), lambda h: (0, 0)),
        compiler_params=pltpu.CompilerParams(
            # The H axis is the Linear-2 contraction -> "arbitrary".
            # TODO(synk): on v7x, split the H axis across the two TensorCores
            # (leading "parallel" axis of size 2 with per-core partial outputs
            # plus a tiny combine+normalize pass) to occupy both cores.
            dimension_semantics=("arbitrary",),
            vmem_limit_bytes=vmem_limit,
        ),
    )(x.astype(jnp.bfloat16), w1_t, gb, w2_t)

    # D_out is already lane-dense padded; slice only if padding was added.
    return out if d_out == d_out_pad else out[:, :d_out]


def reference_forward(x, w1, b1, gamma, beta, w2, mxu_dtype=jnp.float32):
    """Pure-JAX reference of the PyTorch forward (training-mode BN).

    mxu_dtype=bfloat16 emulates the kernel's MXU operand precision (f32 acc).
    """
    h = jnp.dot(x.astype(mxu_dtype), w1.T.astype(mxu_dtype),
                preferred_element_type=jnp.float32) + b1
    mean = jnp.mean(h, axis=0, keepdims=True)
    var = jnp.mean((h - mean) ** 2, axis=0, keepdims=True)
    h = (h - mean) / jnp.sqrt(var + BN_EPS) * gamma + beta
    h = jnp.maximum(h, 0.0)
    z = jnp.dot(h.astype(mxu_dtype), w2.T.astype(mxu_dtype),
                preferred_element_type=jnp.float32)
    norm = jnp.sqrt(jnp.sum(z * z, axis=1, keepdims=True))
    return z / jnp.maximum(norm, NORM_EPS)


if __name__ == "__main__":
    # Small shapes consistent with the module (input/hidden/output dims scaled
    # down, D_out kept lane-dense): batch=16, D_in=256, hidden=512, D_out=128.
    B, D_IN, HIDDEN, D_OUT = 16, 256, 512, 128

    key = jax.random.PRNGKey(0)
    kx, kw1, kb1, kw2, kg, kb = jax.random.split(key, 6)

    x = jax.random.normal(kx, (B, D_IN), dtype=jnp.float32)

    # PyTorch-style uniform Linear init; non-trivial BN affine to exercise it.
    bound1 = 1.0 / (D_IN ** 0.5)
    w1 = jax.random.uniform(kw1, (HIDDEN, D_IN), minval=-bound1, maxval=bound1,
                            dtype=jnp.float32)
    b1 = jax.random.uniform(kb1, (HIDDEN,), minval=-bound1, maxval=bound1,
                            dtype=jnp.float32)
    gamma = 1.0 + 0.1 * jax.random.normal(kg, (HIDDEN,), dtype=jnp.float32)
    beta = 0.1 * jax.random.normal(kb, (HIDDEN,), dtype=jnp.float32)
    bound2 = 1.0 / (HIDDEN ** 0.5)
    w2 = jax.random.uniform(kw2, (D_OUT, HIDDEN), minval=-bound2, maxval=bound2,
                            dtype=jnp.float32)

    ref_bf16 = reference_forward(x, w1, b1, gamma, beta, w2,
                                 mxu_dtype=jnp.bfloat16)
    ref_f32 = reference_forward(x, w1, b1, gamma, beta, w2)

    # 1) Generation-aware auto tile (single H step at these small shapes).
    params = prepare_params(w1, b1, gamma, beta, w2)      # one-time prep
    out = jax.block_until_ready(projection_forward(x, params))
    assert out.shape == (B, D_OUT)
    assert jnp.allclose(out, ref_bf16, atol=5e-3, rtol=5e-3), \
        "auto-tile mismatch vs bf16-operand reference"
    assert jnp.allclose(out, ref_f32, atol=3e-2, rtol=3e-2), \
        "auto-tile mismatch vs f32 reference"

    # 2) Forced small tile to exercise the multi-step accumulation path
    #    (4 H steps -> resident-o_ref accumulation + deeper weight buffering).
    params_small = prepare_params(w1, b1, gamma, beta, w2, tile_h=128)
    out_small = jax.block_until_ready(projection_forward(x, params_small))
    assert out_small.shape == (B, D_OUT)
    assert jnp.allclose(out_small, ref_bf16, atol=5e-3, rtol=5e-3), \
        "small-tile mismatch vs bf16-operand reference"
    assert jnp.allclose(out_small, ref_f32, atol=3e-2, rtol=3e-2), \
        "small-tile mismatch vs f32 reference"

    print("KERNEL_OK")
</pallas_src>

<mosaic_0001>
module attributes {stable_mosaic.version = 11 : i64} {
  func.func @projection_kernel(%arg0: i32, %arg1: memref<16x256xbf16, #tpu.memory_space<vmem>>, %arg2: memref<256x512xbf16, #tpu.memory_space<vmem>>, %arg3: memref<2x512xf32, #tpu.memory_space<vmem>>, %arg4: memref<512x128xbf16, #tpu.memory_space<vmem>>, %arg5: memref<16x128xf32, #tpu.memory_space<vmem>>) attributes {dimension_semantics = [#tpu.dimension_semantics<arbitrary>], iteration_bounds = array<i64: 1>, scalar_prefetch = 0 : i64, scratch_operands = 0 : i64, tpu.core_type = #tpu.core_type<tc>, window_params = [{pipeline_mode = #tpu.pipeline_mode<synchronous>, transform_indices = @transform_0, window_bounds = array<i64: 16, 256>}, {transform_indices = @transform_1, window_bounds = array<i64: 256, 512>}, {transform_indices = @transform_2, window_bounds = array<i64: 2, 512>}, {transform_indices = @transform_3, window_bounds = array<i64: 512, 128>}, {pipeline_mode = #tpu.pipeline_mode<synchronous>, transform_indices = @transform_4, window_bounds = array<i64: 16, 128>}]} {
    %c0_i32 = arith.constant 0 : i32
    %0 = arith.cmpi eq, %arg0, %c0_i32 : i32
    %1 = arith.extui %0 : i1 to i32
    %c0_i32_0 = arith.constant 0 : i32
    %2 = arith.cmpi ne, %1, %c0_i32_0 : i32
    scf.if %2 {
      %cst_22 = arith.constant 0.000000e+00 : f32
      %38 = vector.broadcast %cst_22 : f32 to vector<16x128xf32>
      %c0_23 = arith.constant 0 : index
      %c0_24 = arith.constant 0 : index
      %39 = vector.load %arg5[%c0_23, %c0_24] : memref<16x128xf32, #tpu.memory_space<vmem>>, vector<16x128xf32>
      tpu.vector_store %arg5[%c0_23, %c0_24], %38 {strides = array<i32>} : memref<16x128xf32, #tpu.memory_space<vmem>>, vector<16x128xf32>,
    } else {
    }
    %c0 = arith.constant 0 : index
    %c0_1 = arith.constant 0 : index
    %3 = vector.load %arg1[%c0, %c0_1] : memref<16x256xbf16, #tpu.memory_space<vmem>>, vector<16x256xbf16>
    %c0_2 = arith.constant 0 : index
    %c0_3 = arith.constant 0 : index
    %4 = vector.load %arg2[%c0_2, %c0_3] : memref<256x512xbf16, #tpu.memory_space<vmem>>, vector<256x512xbf16>
    %cst = arith.constant dense<0.000000e+00> : vector<16x512xf32>
    %5 = tpu.matmul %3, %4, %cst {dimension_numbers = #tpu.dot_dimension_numbers<[1], [0], [0], [1], [0, 0, 1, 1], [], []>} : vector<16x256xbf16>, vector<256x512xbf16>, vector<16x512xf32> -> vector<16x512xf32>
    %cst_4 = arith.constant dense<0.000000e+00> : vector<512xf32>
    %6 = vector.multi_reduction <add>, %5, %cst_4 [0] : vector<16x512xf32> to vector<512xf32>
    %7 = vector.shape_cast %6 : vector<512xf32> to vector<1x512xf32>
    %cst_5 = arith.constant 6.250000e-02 : f32
    %8 = vector.broadcast %cst_5 : f32 to vector<1x512xf32>
    %9 = arith.mulf %7, %8 : vector<1x512xf32>
    %10 = vector.broadcast %9 : vector<1x512xf32> to vector<16x512xf32>
    %11 = arith.subf %5, %10 : vector<16x512xf32>
    %12 = arith.mulf %11, %11 : vector<16x512xf32>
    %cst_6 = arith.constant dense<0.000000e+00> : vector<512xf32>
    %13 = vector.multi_reduction <add>, %12, %cst_6 [0] : vector<16x512xf32> to vector<512xf32>
    %14 = vector.shape_cast %13 : vector<512xf32> to vector<1x512xf32>
    %cst_7 = arith.constant 6.250000e-02 : f32
    %15 = vector.broadcast %cst_7 : f32 to vector<1x512xf32>
    %16 = arith.mulf %14, %15 : vector<1x512xf32>
    %c0_8 = arith.constant 0 : index
    %c0_9 = arith.constant 0 : index
    %17 = vector.load %arg3[%c0_8, %c0_9] : memref<2x512xf32, #tpu.memory_space<vmem>>, vector<1x512xf32>
    %cst_10 = arith.constant 9.99999974E-6 : f32
    %18 = vector.broadcast %cst_10 : f32 to vector<1x512xf32>
    %19 = arith.addf %16, %18 : vector<1x512xf32>
    %20 = math.rsqrt %19 : vector<1x512xf32>
    %21 = arith.mulf %17, %20 : vector<1x512xf32>
    %22 = vector.broadcast %21 : vector<1x512xf32> to vector<16x512xf32>
    %23 = arith.mulf %11, %22 : vector<16x512xf32>
    %c1 = arith.constant 1 : index
    %c0_11 = arith.constant 0 : index
    %24 = vector.load %arg3[%c1, %c0_11] : memref<2x512xf32, #tpu.memory_space<vmem>>, vector<1x512xf32>
    %25 = vector.broadcast %24 : vector<1x512xf32> to vector<16x512xf32>
    %26 = arith.addf %23, %25 : vector<16x512xf32>
    %cst_12 = arith.constant 0.000000e+00 : f32
    %27 = vector.broadcast %cst_12 : f32 to vector<16x512xf32>
    %28 = arith.maximumf %26, %27 : vector<16x512xf32>
    %c0_13 = arith.constant 0 : index
    %c0_14 = arith.constant 0 : index
    %29 = vector.load %arg5[%c0_13, %c0_14] : memref<16x128xf32, #tpu.memory_space<vmem>>, vector<16x128xf32>
    %30 = arith.truncf %28 : vector<16x512xf32> to vector<16x512xbf16>
    %c0_15 = arith.constant 0 : index
    %c0_16 = arith.constant 0 : index
    %31 = vector.load %arg4[%c0_15, %c0_16] : memref<512x128xbf16, #tpu.memory_space<vmem>>, vector<512x128xbf16>
    %cst_17 = arith.constant dense<0.000000e+00> : vector<16x128xf32>
    %32 = tpu.matmul %30, %31, %cst_17 {dimension_numbers = #tpu.dot_dimension_numbers<[1], [0], [0], [1], [0, 0, 1, 1], [], []>} : vector<16x512xbf16>, vector<512x128xbf16>, vector<16x128xf32> -> vector<16x128xf32>
    %33 = arith.addf %29, %32 : vector<16x128xf32>
    %c0_18 = arith.constant 0 : index
    %c0_19 = arith.constant 0 : index
    %34 = vector.load %arg5[%c0_18, %c0_19] : memref<16x128xf32, #tpu.memory_space<vmem>>, vector<16x128xf32>
    tpu.vector_store %arg5[%c0_18, %c0_19], %33 {strides = array<i32>} : memref<16x128xf32, #tpu.memory_space<vmem>>, vector<16x128xf32>,
    %c0_i32_20 = arith.constant 0 : i32
    %35 = arith.cmpi eq, %arg0, %c0_i32_20 : i32
    %36 = arith.extui %35 : i1 to i32
    %c0_i32_21 = arith.constant 0 : i32
    %37 = arith.cmpi ne, %36, %c0_i32_21 : i32
    scf.if %37 {
      %c0_22 = arith.constant 0 : index
      %c0_23 = arith.constant 0 : index
      %38 = vector.load %arg5[%c0_22, %c0_23] : memref<16x128xf32, #tpu.memory_space<vmem>>, vector<16x128xf32>
      %39 = arith.mulf %38, %38 : vector<16x128xf32>
      %cst_24 = arith.constant dense<0.000000e+00> : vector<16xf32>
      %40 = vector.multi_reduction <add>, %39, %cst_24 [1] : vector<16x128xf32> to vector<16xf32>
      %41 = vector.shape_cast %40 : vector<16xf32> to vector<16x1xf32>
      %cst_25 = arith.constant 1.000000e-24 : f32
      %42 = vector.broadcast %cst_25 : f32 to vector<16x1xf32>
      %43 = arith.maximumf %41, %42 : vector<16x1xf32>
      %44 = math.rsqrt %43 : vector<16x1xf32>
      %45 = vector.broadcast %44 : vector<16x1xf32> to vector<16x128xf32>
      %46 = arith.mulf %38, %45 : vector<16x128xf32>
      %c0_26 = arith.constant 0 : index
      %c0_27 = arith.constant 0 : index
      %47 = vector.load %arg5[%c0_26, %c0_27] : memref<16x128xf32, #tpu.memory_space<vmem>>, vector<16x128xf32>
      tpu.vector_store %arg5[%c0_26, %c0_27], %46 {strides = array<i32>} : memref<16x128xf32, #tpu.memory_space<vmem>>, vector<16x128xf32>,
    } else {
    }
    return
  }
  func.func @transform_0(%arg0: i32) -> (i32, i32) {
    %c0_i32 = arith.constant 0 : i32
    %c0_i32_0 = arith.constant 0 : i32
    %c0_i32_1 = arith.constant 0 : i32
    return %c0_i32, %c0_i32_0 : i32, i32
  }
  func.func @transform_1(%arg0: i32) -> (i32, i32) {
    %c0_i32 = arith.constant 0 : i32
    %c0_i32_0 = arith.constant 0 : i32
    return %c0_i32, %arg0 : i32, i32
  }
  func.func @transform_2(%arg0: i32) -> (i32, i32) {
    %c0_i32 = arith.constant 0 : i32
    %c0_i32_0 = arith.constant 0 : i32
    return %c0_i32, %arg0 : i32, i32
  }
  func.func @transform_3(%arg0: i32) -> (i32, i32) {
    %c0_i32 = arith.constant 0 : i32
    %c0_i32_0 = arith.constant 0 : i32
    return %arg0, %c0_i32 : i32, i32
  }
  func.func @transform_4(%arg0: i32) -> (i32, i32) {
    %c0_i32 = arith.constant 0 : i32
    %c0_i32_0 = arith.constant 0 : i32
    %c0_i32_1 = arith.constant 0 : i32
    return %c0_i32, %c0_i32_0 : i32, i32
  }
}

</mosaic_0001>

<llo_original>
// kernel: tpu_custom_call.1
$region0: #{tpu_custom_call.1}
  #allocation0 [shape = 'u32[]', space=smem, size = 0x4, offset = 0x4, fixed_abs, tag = 'smem constant byte address 0x4 - core index']
  #allocation1 [shape = 'u32[144,128]{1,0:T(1,128)}', space=vmem, size = 0x12000, scoped, tag = 'internal scratch']
  %s0 = inlined_call_operand.hbm [shape: bf16[16,256], index: 0, kind: input, shape index: {}]
  %s1 = inlined_call_operand.hbm [shape: bf16[256,512], index: 1, kind: input, shape index: {}]
  %s2 = inlined_call_operand.hbm [shape: f32[2,512], index: 2, kind: input, shape index: {}]
  %s3 = inlined_call_operand.hbm [shape: bf16[512,128], index: 3, kind: input, shape index: {}]
  %s4 = inlined_call_operand.hbm [shape: f32[16,128], index: 4, kind: output, shape index: {}]
  %s5 = sld [smem:[#allocation0]]
  $region50: #{tpu_custom_call.1} parent=0
    _
  %s7 = ssub.s32 1, %s5
  %s8 = scalar_select 0, %s7, %s5
  $region1: #{tpu_custom_call.1} parent=0
    #allocation2 [shape = 'u8[8192]{0}', space=vmem, size = 0x2000, scoped, tag = 'input window, operand 0, single buffered']
    #allocation3 [shape = 's32[1]{0}', space=sflag, size = 0x4, scoped, tag = 'scoped memory for tpu_custom_call.1']
    #allocation4 [shape = 's32[1]{0}', space=sflag, size = 0x4, scoped, tag = 'scoped memory for tpu_custom_call.1']
    #allocation5 [shape = 'u8[262144]{0}', space=vmem, size = 0x40000, scoped, tag = 'input window, operand 1, single buffered']
    #allocation6 [shape = 's32[1]{0}', space=sflag, size = 0x4, scoped, tag = 'scoped memory for tpu_custom_call.1']
    #allocation7 [shape = 'u8[4096]{0}', space=vmem, size = 0x1000, scoped, tag = 'input window, operand 2, single buffered']
    #allocation8 [shape = 'u8[131072]{0}', space=vmem, size = 0x20000, scoped, tag = 'input window, operand 3, single buffered']
    #allocation9 [shape = 's32[1]{0}', space=sflag, size = 0x4, scoped, tag = 'scoped memory for tpu_custom_call.1']
    #allocation10 [shape = 'u8[8192]{0}', space=vmem, size = 0x2000, scoped, tag = 'output window, operand 0, single buffered']
    %9 = vsyncpa [#allocation3], 0
    %10 = vsyncpa [#allocation6], 0
    %11 = vsyncpa [#allocation9], 0
    %12 = vsyncpa [#allocation4], 0
    // Predicated region
    $region2: #{tpu_custom_call.1} parent=1 // pred_check
      _
    $region3: #{tpu_custom_call.1} parent=1 // pred_check_branch
      %14 = sbr.rel (0) target = $region5
    $region4: #{tpu_custom_call.1} parent=1 // pred_region
      %s16 = ssub.s32 256, 256
      %17 = vsyncadd [#allocation3], %s16
      %s18 = sshll.u32 [#allocation2], 4
      %s19 = int_to_ptr.vmem [resolvable:$true] %s18
      %24 = dma.hbm_to_vmem [thread:$0]  %s0, 256, %s19, [#allocation3], 128, 128, 8
    $region5: #{tpu_custom_call.1} parent=1 // pred_fallthru
      _
    // Predicated region
    $region6: #{tpu_custom_call.1} parent=1 // pred_check
      _
    $region7: #{tpu_custom_call.1} parent=1 // pred_check_branch
      %26 = sbr.rel (0) target = $region9
    $region8: #{tpu_custom_call.1} parent=1 // pred_region
      %s28 = ssub.s32 8192, 8192
      %29 = vsyncadd [#allocation6], %s28
      %s30 = sshll.u32 [#allocation5], 4
      %s31 = int_to_ptr.vmem [resolvable:$true] %s30
      %36 = dma.hbm_to_vmem [thread:$0]  %s1, 8192, %s31, [#allocation6], 256, 256, 16
    $region9: #{tpu_custom_call.1} parent=1 // pred_fallthru
      _
    // Predicated region
    $region10: #{tpu_custom_call.1} parent=1 // pred_check
      _
    $region11: #{tpu_custom_call.1} parent=1 // pred_check_branch
      %38 = sbr.rel (0) target = $region13
    $region12: #{tpu_custom_call.1} parent=1 // pred_region
      %s40 = ssub.s32 128, 128
      %41 = vsyncadd [#allocation6], %s40
      %s43 = sshll.u32 [#allocation7], 4
      %s44 = int_to_ptr.vmem [resolvable:$true] %s43
      %46 = dma.hbm_to_vmem [thread:$0]  %s2, 128, %s44, [#allocation6]
    $region13: #{tpu_custom_call.1} parent=1 // pred_fallthru
      _
    // Predicated region
    $region14: #{tpu_custom_call.1} parent=1 // pred_check
      _
    $region15: #{tpu_custom_call.1} parent=1 // pred_check_branch
      %48 = sbr.rel (0) target = $region17
    $region16: #{tpu_custom_call.1} parent=1 // pred_region
      %s50 = ssub.s32 4096, 4096
      %51 = vsyncadd [#allocation9], %s50
      %s52 = sshll.u32 [#allocation8], 4
      %s53 = int_to_ptr.vmem [resolvable:$true] %s52
      %58 = dma.hbm_to_vmem [thread:$0]  %s3, 4096, %s53, [#allocation9], 64, 64, 4
    $region17: #{tpu_custom_call.1} parent=1 // pred_fallthru
      _
    // Predicated region
    $region18: #{tpu_custom_call.1} parent=1 // pred_check
      _
    $region19: #{tpu_custom_call.1} parent=1 // pred_check_branch
      %60 = sbr.rel (0) target = $region21
    $region20: #{tpu_custom_call.1} parent=1 // pred_region
      %61 = dma.done [#allocation3], 256
    $region21: #{tpu_custom_call.1} parent=1 // pred_fallthru
      _
    // Predicated region
    $region22: #{tpu_custom_call.1} parent=1 // pred_check
      _
    $region23: #{tpu_custom_call.1} parent=1 // pred_check_branch
      %63 = sbr.rel (0) target = $region25
    $region24: #{tpu_custom_call.1} parent=1 // pred_region
      %64 = dma.done [#allocation6], 8192
    $region25: #{tpu_custom_call.1} parent=1 // pred_fallthru
      _
    // Predicated region
    $region26: #{tpu_custom_call.1} parent=1 // pred_check
      _
    $region27: #{tpu_custom_call.1} parent=1 // pred_check_branch
      %66 = sbr.rel (0) target = $region29
    $region28: #{tpu_custom_call.1} parent=1 // pred_region
      %67 = dma.done [#allocation6], 128
    $region29: #{tpu_custom_call.1} parent=1 // pred_fallthru
      _
    // Predicated region
    $region30: #{tpu_custom_call.1} parent=1 // pred_check
      _
    $region31: #{tpu_custom_call.1} parent=1 // pred_check_branch
      %69 = sbr.rel (0) target = $region33
    $region32: #{tpu_custom_call.1} parent=1 // pred_region
      %70 = dma.done [#allocation9], 4096
    $region33: #{tpu_custom_call.1} parent=1 // pred_fallthru
      _
    %p72 = scmp.eq.s32.totalorder 0, 0
    // Predicated region
    $region34: #{tpu_custom_call.1} parent=1 // pred_check
      %p73 = pneg %p72
    $region35: #{tpu_custom_call.1} parent=1 // pred_check_branch
      %75 = sbr.rel (%p73) target = $region37
    $region36: #{tpu_custom_call.1} parent=1 // pred_region
      %76 = vst [vmem:[#allocation10] sm:$0xff] 0.0
      %77 = vst [vmem:[#allocation10 + $0x8] sm:$0xff] 0.0
    $region37: #{tpu_custom_call.1} parent=1 // pred_fallthru
      _
    %v78 = vld [vmem:[#allocation2] sm:$0xff]
    %v79 = vld [vmem:[#allocation2 + $0x8] sm:$0xff]
    %v80 = vld [vmem:[#allocation5] sm:$0xff]
    %v81 = vld [vmem:[#allocation5 + $0x8] sm:$0xff]
    %v82 = vld [vmem:[#allocation5 + $0x10] sm:$0xff]
    %v83 = vld [vmem:[#allocation5 + $0x18] sm:$0xff]
    %v84 = vld [vmem:[#allocation5 + $0x20] sm:$0xff]
    %v85 = vld [vmem:[#allocation5 + $0x28] sm:$0xff]
    %v86 = vld [vmem:[#allocation5 + $0x30] sm:$0xff]
    %v87 = vld [vmem:[#allocation5 + $0x38] sm:$0xff]
    %v88 = vld [vmem:[#allocation5 + $0x40] sm:$0xff]
    %v89 = vld [vmem:[#allocation5 + $0x48] sm:$0xff]
    %v90 = vld [vmem:[#allocation5 + $0x50] sm:$0xff]
    %v91 = vld [vmem:[#allocation5 + $0x58] sm:$0xff]
    %v92 = vld [vmem:[#allocation5 + $0x60] sm:$0xff]
    %v93 = vld [vmem:[#allocation5 + $0x68] sm:$0xff]
    %v94 = vld [vmem:[#allocation5 + $0x70] sm:$0xff]
    %v95 = vld [vmem:[#allocation5 + $0x78] sm:$0xff]
    %v96 = vld [vmem:[#allocation5 + $0x80] sm:$0xff]
    %v97 = vld [vmem:[#allocation5 + $0x88] sm:$0xff]
    %v98 = vld [vmem:[#allocation5 + $0x90] sm:$0xff]
    %v99 = vld [vmem:[#allocation5 + $0x98] sm:$0xff]
    %v100 = vld [vmem:[#allocation5 + $0xa0] sm:$0xff]
    %v101 = vld [vmem:[#allocation5 + $0xa8] sm:$0xff]
    %v102 = vld [vmem:[#allocation5 + $0xb0] sm:$0xff]
    %v103 = vld [vmem:[#allocation5 + $0xb8] sm:$0xff]
    %v104 = vld [vmem:[#allocation5 + $0xc0] sm:$0xff]
    %v105 = vld [vmem:[#allocation5 + $0xc8] sm:$0xff]
    %v106 = vld [vmem:[#allocation5 + $0xd0] sm:$0xff]
    %v107 = vld [vmem:[#allocation5 + $0xd8] sm:$0xff]
    %v108 = vld [vmem:[#allocation5 + $0xe0] sm:$0xff]
    %v109 = vld [vmem:[#allocation5 + $0xe8] sm:$0xff]
    %v110 = vld [vmem:[#allocation5 + $0xf0] sm:$0xff]
    %v111 = vld [vmem:[#allocation5 + $0xf8] sm:$0xff]
    %v112 = vld [vmem:[#allocation5 + $0x100] sm:$0xff]
    %v113 = vld [vmem:[#allocation5 + $0x108] sm:$0xff]
    %v114 = vld [vmem:[#allocation5 + $0x110] sm:$0xff]
    %v115 = vld [vmem:[#allocation5 + $0x118] sm:$0xff]
    %v116 = vld [vmem:[#allocation5 + $0x120] sm:$0xff]
    %v117 = vld [vmem:[#allocation5 + $0x128] sm:$0xff]
    %v118 = vld [vmem:[#allocation5 + $0x130] sm:$0xff]
    %v119 = vld [vmem:[#allocation5 + $0x138] sm:$0xff]
    %v120 = vld [vmem:[#allocation5 + $0x140] sm:$0xff]
    %v121 = vld [vmem:[#allocation5 + $0x148] sm:$0xff]
    %v122 = vld [vmem:[#allocation5 + $0x150] sm:$0xff]
    %v123 = vld [vmem:[#allocation5 + $0x158] sm:$0xff]
    %v124 = vld [vmem:[#allocation5 + $0x160] sm:$0xff]
    %v125 = vld [vmem:[#allocation5 + $0x168] sm:$0xff]
    %v126 = vld [vmem:[#allocation5 + $0x170] sm:$0xff]
    %v127 = vld [vmem:[#allocation5 + $0x178] sm:$0xff]
    %v128 = vld [vmem:[#allocation5 + $0x180] sm:$0xff]
    %v129 = vld [vmem:[#allocation5 + $0x188] sm:$0xff]
    %v130 = vld [vmem:[#allocation5 + $0x190] sm:$0xff]
    %v131 = vld [vmem:[#allocation5 + $0x198] sm:$0xff]
    %v132 = vld [vmem:[#allocation5 + $0x1a0] sm:$0xff]
    %v133 = vld [vmem:[#allocation5 + $0x1a8] sm:$0xff]
    %v134 = vld [vmem:[#allocation5 + $0x1b0] sm:$0xff]
    %v135 = vld [vmem:[#allocation5 + $0x1b8] sm:$0xff]
    %v136 = vld [vmem:[#allocation5 + $0x1c0] sm:$0xff]
    %v137 = vld [vmem:[#allocation5 + $0x1c8] sm:$0xff]
    %v138 = vld [vmem:[#allocation5 + $0x1d0] sm:$0xff]
    %v139 = vld [vmem:[#allocation5 + $0x1d8] sm:$0xff]
    %v140 = vld [vmem:[#allocation5 + $0x1e0] sm:$0xff]
    %v141 = vld [vmem:[#allocation5 + $0x1e8] sm:$0xff]
    %v142 = vld [vmem:[#allocation5 + $0x1f0] sm:$0xff]
    %v143 = vld [vmem:[#allocation5 + $0x1f8] sm:$0xff]
    %v146 = vunpack.c.l.b16 %v78
    %v147 = vunpack.c.h.b16 %v78
    %v148 = vunpack.c.l.b16 %v79
    %v149 = vunpack.c.h.b16 %v79
    %v150 = vpack.c.b16 %v148, %v146
    %v151 = vpack.c.b16 %v149, %v147
    %v218 = vunpack.c.l.b16 %v80
    %v219 = vunpack.c.h.b16 %v80
    %v220 = vunpack.c.l.b16 %v81
    %v221 = vunpack.c.h.b16 %v81
    %v222 = vunpack.c.l.b16 %v82
    %v223 = vunpack.c.h.b16 %v82
    %v224 = vunpack.c.l.b16 %v83
    %v225 = vunpack.c.h.b16 %v83
    %v226 = vunpack.c.l.b16 %v84
    %v227 = vunpack.c.h.b16 %v84
    %v228 = vunpack.c.l.b16 %v85
    %v229 = vunpack.c.h.b16 %v85
    %v230 = vunpack.c.l.b16 %v86
    %v231 = vunpack.c.h.b16 %v86
    %v232 = vunpack.c.l.b16 %v87
    %v233 = vunpack.c.h.b16 %v87
    %v234 = vunpack.c.l.b16 %v88
    %v235 = vunpack.c.h.b16 %v88
    %v236 = vunpack.c.l.b16 %v89
    %v237 = vunpack.c.h.b16 %v89
    %v238 = vunpack.c.l.b16 %v90
    %v239 = vunpack.c.h.b16 %v90
    %v240 = vunpack.c.l.b16 %v91
    %v241 = vunpack.c.h.b16 %v91
    %v242 = vunpack.c.l.b16 %v92
    %v243 = vunpack.c.h.b16 %v92
    %v244 = vunpack.c.l.b16 %v93
    %v245 = vunpack.c.h.b16 %v93
    %v246 = vunpack.c.l.b16 %v94
    %v247 = vunpack.c.h.b16 %v94
    %v248 = vunpack.c.l.b16 %v95
    %v249 = vunpack.c.h.b16 %v95
    %v250 = vunpack.c.l.b16 %v96
    %v251 = vunpack.c.h.b16 %v96
    %v252 = vunpack.c.l.b16 %v97
    %v253 = vunpack.c.h.b16 %v97
    %v254 = vunpack.c.l.b16 %v98
    %v255 = vunpack.c.h.b16 %v98
    %v256 = vunpack.c.l.b16 %v99
    %v257 = vunpack.c.h.b16 %v99
    %v258 = vunpack.c.l.b16 %v100
    %v259 = vunpack.c.h.b16 %v100
    %v260 = vunpack.c.l.b16 %v101
    %v261 = vunpack.c.h.b16 %v101
    %v262 = vunpack.c.l.b16 %v102
    %v263 = vunpack.c.h.b16 %v102
    %v264 = vunpack.c.l.b16 %v103
    %v265 = vunpack.c.h.b16 %v103
    %v266 = vunpack.c.l.b16 %v104
    %v267 = vunpack.c.h.b16 %v104
    %v268 = vunpack.c.l.b16 %v105
    %v269 = vunpack.c.h.b16 %v105
    %v270 = vunpack.c.l.b16 %v106
    %v271 = vunpack.c.h.b16 %v106
    %v272 = vunpack.c.l.b16 %v107
    %v273 = vunpack.c.h.b16 %v107
    %v274 = vunpack.c.l.b16 %v108
    %v275 = vunpack.c.h.b16 %v108
    %v276 = vunpack.c.l.b16 %v109
    %v277 = vunpack.c.h.b16 %v109
    %v278 = vunpack.c.l.b16 %v110
    %v279 = vunpack.c.h.b16 %v110
    %v280 = vunpack.c.l.b16 %v111
    %v281 = vunpack.c.h.b16 %v111
    %v282 = vunpack.c.l.b16 %v112
    %v283 = vunpack.c.h.b16 %v112
    %v284 = vunpack.c.l.b16 %v113
    %v285 = vunpack.c.h.b16 %v113
    %v286 = vunpack.c.l.b16 %v114
    %v287 = vunpack.c.h.b16 %v114
    %v288 = vunpack.c.l.b16 %v115
    %v289 = vunpack.c.h.b16 %v115
    %v290 = vunpack.c.l.b16 %v116
    %v291 = vunpack.c.h.b16 %v116
    %v292 = vunpack.c.l.b16 %v117
    %v293 = vunpack.c.h.b16 %v117
    %v294 = vunpack.c.l.b16 %v118
    %v295 = vunpack.c.h.b16 %v118
    %v296 = vunpack.c.l.b16 %v119
    %v297 = vunpack.c.h.b16 %v119
    %v298 = vunpack.c.l.b16 %v120
    %v299 = vunpack.c.h.b16 %v120
    %v300 = vunpack.c.l.b16 %v121
    %v301 = vunpack.c.h.b16 %v121
    %v302 = vunpack.c.l.b16 %v122
    %v303 = vunpack.c.h.b16 %v122
    %v304 = vunpack.c.l.b16 %v123
    %v305 = vunpack.c.h.b16 %v123
    %v306 = vunpack.c.l.b16 %v124
    %v307 = vunpack.c.h.b16 %v124
    %v308 = vunpack.c.l.b16 %v125
    %v309 = vunpack.c.h.b16 %v125
    %v310 = vunpack.c.l.b16 %v126
    %v311 = vunpack.c.h.b16 %v126
    %v312 = vunpack.c.l.b16 %v127
    %v313 = vunpack.c.h.b16 %v127
    %v314 = vunpack.c.l.b16 %v128
    %v315 = vunpack.c.h.b16 %v128
    %v316 = vunpack.c.l.b16 %v129
    %v317 = vunpack.c.h.b16 %v129
    %v318 = vunpack.c.l.b16 %v130
    %v319 = vunpack.c.h.b16 %v130
    %v320 = vunpack.c.l.b16 %v131
    %v321 = vunpack.c.h.b16 %v131
    %v322 = vunpack.c.l.b16 %v132
    %v323 = vunpack.c.h.b16 %v132
    %v324 = vunpack.c.l.b16 %v133
    %v325 = vunpack.c.h.b16 %v133
    %v326 = vunpack.c.l.b16 %v134
    %v327 = vunpack.c.h.b16 %v134
    %v328 = vunpack.c.l.b16 %v135
    %v329 = vunpack.c.h.b16 %v135
    %v330 = vunpack.c.l.b16 %v136
    %v331 = vunpack.c.h.b16 %v136
    %v332 = vunpack.c.l.b16 %v137
    %v333 = vunpack.c.h.b16 %v137
    %v334 = vunpack.c.l.b16 %v138
    %v335 = vunpack.c.h.b16 %v138
    %v336 = vunpack.c.l.b16 %v139
    %v337 = vunpack.c.h.b16 %v139
    %v338 = vunpack.c.l.b16 %v140
    %v339 = vunpack.c.h.b16 %v140
    %v340 = vunpack.c.l.b16 %v141
    %v341 = vunpack.c.h.b16 %v141
    %v342 = vunpack.c.l.b16 %v142
    %v343 = vunpack.c.h.b16 %v142
    %v344 = vunpack.c.l.b16 %v143
    %v345 = vunpack.c.h.b16 %v143
    %v346 = vpack.c.b16 %v222, %v218
    %v347 = vpack.c.b16 %v223, %v219
    %v348 = vpack.c.b16 %v224, %v220
    %v349 = vpack.c.b16 %v225, %v221
    %v350 = vpack.c.b16 %v230, %v226
    %v351 = vpack.c.b16 %v231, %v227
    %v352 = vpack.c.b16 %v232, %v228
    %v353 = vpack.c.b16 %v233, %v229
    %v354 = vpack.c.b16 %v238, %v234
    %v355 = vpack.c.b16 %v239, %v235
    %v356 = vpack.c.b16 %v240, %v236
    %v357 = vpack.c.b16 %v241, %v237
    %v358 = vpack.c.b16 %v246, %v242
    %v359 = vpack.c.b16 %v247, %v243
    %v360 = vpack.c.b16 %v248, %v244
    %v361 = vpack.c.b16 %v249, %v245
    %v362 = vpack.c.b16 %v254, %v250
    %v363 = vpack.c.b16 %v255, %v251
    %v364 = vpack.c.b16 %v256, %v252
    %v365 = vpack.c.b16 %v257, %v253
    %v366 = vpack.c.b16 %v262, %v258
    %v367 = vpack.c.b16 %v263, %v259
    %v368 = vpack.c.b16 %v264, %v260
    %v369 = vpack.c.b16 %v265, %v261
    %v370 = vpack.c.b16 %v270, %v266
    %v371 = vpack.c.b16 %v271, %v267
    %v372 = vpack.c.b16 %v272, %v268
    %v373 = vpack.c.b16 %v273, %v269
    %v374 = vpack.c.b16 %v278, %v274
    %v375 = vpack.c.b16 %v279, %v275
    %v376 = vpack.c.b16 %v280, %v276
    %v377 = vpack.c.b16 %v281, %v277
    %v378 = vpack.c.b16 %v286, %v282
    %v379 = vpack.c.b16 %v287, %v283
    %v380 = vpack.c.b16 %v288, %v284
    %v381 = vpack.c.b16 %v289, %v285
    %v382 = vpack.c.b16 %v294, %v290
    %v383 = vpack.c.b16 %v295, %v291
    %v384 = vpack.c.b16 %v296, %v292
    %v385 = vpack.c.b16 %v297, %v293
    %v386 = vpack.c.b16 %v302, %v298
    %v387 = vpack.c.b16 %v303, %v299
    %v388 = vpack.c.b16 %v304, %v300
    %v389 = vpack.c.b16 %v305, %v301
    %v390 = vpack.c.b16 %v310, %v306
    %v391 = vpack.c.b16 %v311, %v307
    %v392 = vpack.c.b16 %v312, %v308
    %v393 = vpack.c.b16 %v313, %v309
    %v394 = vpack.c.b16 %v318, %v314
    %v395 = vpack.c.b16 %v319, %v315
    %v396 = vpack.c.b16 %v320, %v316
    %v397 = vpack.c.b16 %v321, %v317
    %v398 = vpack.c.b16 %v326, %v322
    %v399 = vpack.c.b16 %v327, %v323
    %v400 = vpack.c.b16 %v328, %v324
    %v401 = vpack.c.b16 %v329, %v325
    %v402 = vpack.c.b16 %v334, %v330
    %v403 = vpack.c.b16 %v335, %v331
    %v404 = vpack.c.b16 %v336, %v332
    %v405 = vpack.c.b16 %v337, %v333
    %v406 = vpack.c.b16 %v342, %v338
    %v407 = vpack.c.b16 %v343, %v339
    %v408 = vpack.c.b16 %v344, %v340
    %v409 = vpack.c.b16 %v345, %v341
    %474 = vmatprep.subr.bf16.mxu0 %v375
    %475 = vmatpush1.bf16.msra.mxu0 %v374
    %476 = vmatprep.subr.bf16.mxu0 %v371
    %477 = vmatpush1.bf16.msra.mxu0 %v370
    %478 = vmatprep.subr.bf16.mxu0 %v367
    %479 = vmatpush1.bf16.msra.mxu0 %v366
    %480 = vmatprep.subr.bf16.mxu0 %v363
    %481 = vmatpush1.bf16.msra.mxu0 %v362
    %482 = vmatprep.subr.bf16.mxu0 %v359
    %483 = vmatpush1.bf16.msra.mxu0 %v358
    %484 = vmatprep.subr.bf16.mxu0 %v355
    %485 = vmatpush1.bf16.msra.mxu0 %v354
    %486 = vmatprep.subr.bf16.mxu0 %v351
    %487 = vmatpush1.bf16.msra.mxu0 %v350
    %488 = vmatprep.subr.bf16.mxu0 %v347
    %489 = vmatpush1.bf16.msra.mxu0 %v346
    %490 = vmatprep.subr.bf16.mxu0 %v407
    %491 = vmatpush2.bf16.msra.mxu0 %v406
    %492 = vmatprep.subr.bf16.mxu0 %v403
    %493 = vmatpush2.bf16.msra.mxu0 %v402
    %494 = vmatprep.subr.bf16.mxu0 %v399
    %495 = vmatpush2.bf16.msra.mxu0 %v398
    %496 = vmatprep.subr.bf16.mxu0 %v395
    %497 = vmatpush2.bf16.msra.mxu0 %v394
    %498 = vmatprep.subr.bf16.mxu0 %v391
    %499 = vmatpush2.bf16.msra.mxu0 %v390
    %500 = vmatprep.subr.bf16.mxu0 %v387
    %501 = vmatpush2.bf16.msra.mxu0 %v386
    %502 = vmatprep.subr.bf16.mxu0 %v383
    %503 = vmatpush2.bf16.msra.mxu0 %v382
    %504 = vmatprep.subr.bf16.mxu0 %v379
    %505 = vmatpush2.bf16.msra.mxu0 %v378
    %506 = vmatprep.mubr.bf16.mxu0 %v151
    %507 = vmatmul.mubr.bf16.gmra.mxu0 %v150
    %v508 = vpop.f32.mrf.mxu0
    %v509 = vadd.f32 0.0, %v508
    %v510 = vpop.f32.mrf.mxu0
    %v511 = vadd.f32 0.0, %v510
    %v512 = vpop.f32.mrf.mxu0
    %v513 = vadd.f32 0.0, %v512
    %v514 = vpop.f32.mrf.mxu0
    %v515 = vadd.f32 0.0, %v514
    %516 = vdwg.mxu0
    %517 = vmatprep.subr.bf16.mxu0 %v377
    %518 = vmatpush1.bf16.msra.mxu0 %v376
    %519 = vmatprep.subr.bf16.mxu0 %v373
    %520 = vmatpush1.bf16.msra.mxu0 %v372
    %521 = vmatprep.subr.bf16.mxu0 %v369
    %522 = vmatpush1.bf16.msra.mxu0 %v368
    %523 = vmatprep.subr.bf16.mxu0 %v365
    %524 = vmatpush1.bf16.msra.mxu0 %v364
    %525 = vmatprep.subr.bf16.mxu0 %v361
    %526 = vmatpush1.bf16.msra.mxu0 %v360
    %527 = vmatprep.subr.bf16.mxu0 %v357
    %528 = vmatpush1.bf16.msra.mxu0 %v356
    %529 = vmatprep.subr.bf16.mxu0 %v353
    %530 = vmatpush1.bf16.msra.mxu0 %v352
    %531 = vmatprep.subr.bf16.mxu0 %v349
    %532 = vmatpush1.bf16.msra.mxu0 %v348
    %533 = vmatprep.subr.bf16.mxu0 %v409
    %534 = vmatpush2.bf16.msra.mxu0 %v408
    %535 = vmatprep.subr.bf16.mxu0 %v405
    %536 = vmatpush2.bf16.msra.mxu0 %v404
    %537 = vmatprep.subr.bf16.mxu0 %v401
    %538 = vmatpush2.bf16.msra.mxu0 %v400
    %539 = vmatprep.subr.bf16.mxu0 %v397
    %540 = vmatpush2.bf16.msra.mxu0 %v396
    %541 = vmatprep.subr.bf16.mxu0 %v393
    %542 = vmatpush2.bf16.msra.mxu0 %v392
    %543 = vmatprep.subr.bf16.mxu0 %v389
    %544 = vmatpush2.bf16.msra.mxu0 %v388
    %545 = vmatprep.subr.bf16.mxu0 %v385
    %546 = vmatpush2.bf16.msra.mxu0 %v384
    %547 = vmatprep.subr.bf16.mxu0 %v381
    %548 = vmatpush2.bf16.msra.mxu0 %v380
    %549 = vmatprep.mubr.bf16.mxu0 %v151
    %550 = vmatmul.mubr.bf16.gmra.mxu0 %v150
    %v551 = vpop.f32.mrf.mxu0
    %v552 = vadd.f32 0.0, %v551
    %v553 = vpop.f32.mrf.mxu0
    %v554 = vadd.f32 0.0, %v553
    %v555 = vpop.f32.mrf.mxu0
    %v556 = vadd.f32 0.0, %v555
    %v557 = vpop.f32.mrf.mxu0
    %v558 = vadd.f32 0.0, %v557
    %559 = vdwg.mxu0
    %v560 = vadd.f32 %v509, %v513
    %v561 = vrot.slane %v560, 4
    %v562 = vadd.f32 %v560, %v561
    %v563 = vrot.slane %v562, 2
    %v564 = vadd.f32 %v562, %v563
    %v565 = vrot.slane %v564, 1
    %v566 = vadd.f32 %v564, %v565
    %v567 = vadd.f32 %v511, %v515
    %v568 = vrot.slane %v567, 4
    %v569 = vadd.f32 %v567, %v568
    %v570 = vrot.slane %v569, 2
    %v571 = vadd.f32 %v569, %v570
    %v572 = vrot.slane %v571, 1
    %v573 = vadd.f32 %v571, %v572
    %v574 = vadd.f32 %v552, %v556
    %v575 = vrot.slane %v574, 4
    %v576 = vadd.f32 %v574, %v575
    %v577 = vrot.slane %v576, 2
    %v578 = vadd.f32 %v576, %v577
    %v579 = vrot.slane %v578, 1
    %v580 = vadd.f32 %v578, %v579
    %v581 = vadd.f32 %v554, %v558
    %v582 = vrot.slane %v581, 4
    %v583 = vadd.f32 %v581, %v582
    %v584 = vrot.slane %v583, 2
    %v585 = vadd.f32 %v583, %v584
    %v586 = vrot.slane %v585, 1
    %v587 = vadd.f32 %v585, %v586
    %v588 = vmul.f32 %v566, 0.0625
    %v589 = vmul.f32 %v573, 0.0625
    %v590 = vmul.f32 %v580, 0.0625
    %v591 = vmul.f32 %v587, 0.0625
    %v592 = vsub.f32 %v509, %v588
    %v593 = vsub.f32 %v511, %v589
    %v594 = vsub.f32 %v552, %v590
    %v595 = vsub.f32 %v554, %v591
    %v596 = vsub.f32 %v513, %v588
    %v597 = vsub.f32 %v515, %v589
    %v598 = vsub.f32 %v556, %v590
    %v599 = vsub.f32 %v558, %v591
    %v600 = vmul.f32 %v592, %v592
    %v601 = vmul.f32 %v593, %v593
    %v602 = vmul.f32 %v594, %v594
    %v603 = vmul.f32 %v595, %v595
    %v604 = vmul.f32 %v596, %v596
    %v605 = vmul.f32 %v597, %v597
    %v606 = vmul.f32 %v598, %v598
    %v607 = vmul.f32 %v599, %v599
    %v608 = vadd.f32 %v600, %v604
    %v609 = vrot.slane %v608, 4
    %v610 = vadd.f32 %v608, %v609
    %v611 = vrot.slane %v610, 2
    %v612 = vadd.f32 %v610, %v611
    %v613 = vrot.slane %v612, 1
    %v614 = vadd.f32 %v612, %v613
    %v615 = vadd.f32 %v601, %v605
    %v616 = vrot.slane %v615, 4
    %v617 = vadd.f32 %v615, %v616
    %v618 = vrot.slane %v617, 2
    %v619 = vadd.f32 %v617, %v618
    %v620 = vrot.slane %v619, 1
    %v621 = vadd.f32 %v619, %v620
    %v622 = vadd.f32 %v602, %v606
    %v623 = vrot.slane %v622, 4
    %v624 = vadd.f32 %v622, %v623
    %v625 = vrot.slane %v624, 2
    %v626 = vadd.f32 %v624, %v625
    %v627 = vrot.slane %v626, 1
    %v628 = vadd.f32 %v626, %v627
    %v629 = vadd.f32 %v603, %v607
    %v630 = vrot.slane %v629, 4
    %v631 = vadd.f32 %v629, %v630
    %v632 = vrot.slane %v631, 2
    %v633 = vadd.f32 %v631, %v632
    %v634 = vrot.slane %v633, 1
    %v635 = vadd.f32 %v633, %v634
    %v636 = vmul.f32 %v614, 0.0625
    %v637 = vmul.f32 %v621, 0.0625
    %v638 = vmul.f32 %v628, 0.0625
    %v639 = vmul.f32 %v635, 0.0625
    %v640 = vld [vmem:[#allocation7] ss:$2 sm:$0xf]
    %v641 = vadd.f32 %v636, 1e-05
    %v642 = vadd.f32 %v637, 1e-05
    %v643 = vadd.f32 %v638, 1e-05
    %v644 = vadd.f32 %v639, 1e-05
    %v645 = vrsqrt.pop %v641
    %v646 = vrsqrt.pop %v642
    %v647 = vrsqrt.pop %v643
    %v648 = vrsqrt.pop %v644
    %v653 = vcombine.low %v645, %v646
    %v654 = vcombine.low %v647, %v648
    %v656 = vunpack.c.l.s4 1966171168
    %v657 = vunpack.c.0.s8 %v656
    %v658 = vlaneseq
    %v659 = vshrl.u32 %v658, 7
    %v660 = vsub.s32 %v657, %v659
    %v661 = vrot.slane %v653, %v660
    %v663 = vunpack.c.l.s4 1966171168
    %v664 = vunpack.c.0.s8 %v663
    %v665 = vlaneseq
    %v666 = vshrl.u32 %v665, 7
    %v667 = vsub.s32 %v664, %v666
    %v668 = vrot.slane %v654, %v667
    %v669 = vcombine.low %v661, %v668
    %v671 = vunpack.c.l.s4 1966171168
    %v672 = vunpack.c.0.s8 %v671
    %v673 = vlaneseq
    %v674 = vshrl.u32 %v673, 7
    %v675 = vsub.s32 %v672, %v674
    %v676 = vrot.slane %v669, %v675
    %v678 = vmul.f32 %v640, %v676
    %v680 = vlaneseq
    %v681 = vshrl.u32 %v680, 7
    %v682 = vsub.s32 0, %v681
    %v683 = vrot.slane %v678, %v682
    %v684 = vlaneseq
    %v685 = vshrl.u32 %v684, 7
    %v686 = vsub.s32 1, %v685
    %v687 = vrot.slane %v678, %v686
    %v688 = vlaneseq
    %v689 = vshrl.u32 %v688, 7
    %v690 = vsub.s32 2, %v689
    %v691 = vrot.slane %v678, %v690
    %v692 = vlaneseq
    %v693 = vshrl.u32 %v692, 7
    %v694 = vsub.s32 3, %v693
    %v695 = vrot.slane %v678, %v694
    %v700 = vmul.f32 %v592, %v683
    %v701 = vmul.f32 %v593, %v687
    %v702 = vmul.f32 %v594, %v691
    %v703 = vmul.f32 %v595, %v695
    %v704 = vmul.f32 %v596, %v683
    %v705 = vmul.f32 %v597, %v687
    %v706 = vmul.f32 %v598, %v691
    %v707 = vmul.f32 %v599, %v695
    %s708 = scalar_lea.vmem [#allocation7], 1
    %v709 = vld [vmem:[%s708] ss:$2 sm:$0xf]
    %v711 = vlaneseq
    %v712 = vshrl.u32 %v711, 7
    %v713 = vsub.s32 0, %v712
    %v714 = vrot.slane %v709, %v713
    %v715 = vlaneseq
    %v716 = vshrl.u32 %v715, 7
    %v717 = vsub.s32 1, %v716
    %v718 = vrot.slane %v709, %v717
    %v719 = vlaneseq
    %v720 = vshrl.u32 %v719, 7
    %v721 = vsub.s32 2, %v720
    %v722 = vrot.slane %v709, %v721
    %v723 = vlaneseq
    %v724 = vshrl.u32 %v723, 7
    %v725 = vsub.s32 3, %v724
    %v726 = vrot.slane %v709, %v725
    %v731 = vadd.f32 %v700, %v714
    %v732 = vadd.f32 %v701, %v718
    %v733 = vadd.f32 %v702, %v722
    %v734 = vadd.f32 %v703, %v726
    %v735 = vadd.f32 %v704, %v714
    %v736 = vadd.f32 %v705, %v718
    %v737 = vadd.f32 %v706, %v722
    %v738 = vadd.f32 %v707, %v726
    %v739 = vmax.f32 %v731, 0.0
    %v740 = vmax.f32 %v732, 0.0
    %v741 = vmax.f32 %v733, 0.0
    %v742 = vmax.f32 %v734, 0.0
    %v743 = vmax.f32 %v735, 0.0
    %v744 = vmax.f32 %v736, 0.0
    %v745 = vmax.f32 %v737, 0.0
    %v746 = vmax.f32 %v738, 0.0
    %v747 = vld [vmem:[#allocation10] sm:$0xff]
    %v748 = vld [vmem:[#allocation10 + $0x8] sm:$0xff]
    %v749 = vpack.c.bf16 %v743, %v739
    %v750 = vpack.c.bf16 %v744, %v740
    %v751 = vpack.c.bf16 %v745, %v741
    %v752 = vpack.c.bf16 %v746, %v742
    %v753 = vld [vmem:[#allocation8] sm:$0xf]
    %v754 = vld [vmem:[#allocation8 + $0x4] sm:$0xf]
    %v755 = vld [vmem:[#allocation8 + $0x8] sm:$0xf]
    %v756 = vld [vmem:[#allocation8 + $0xc] sm:$0xf]
    %v757 = vld [vmem:[#allocation8 + $0x10] sm:$0xf]
    %v758 = vld [vmem:[#allocation8 + $0x14] sm:$0xf]
    %v759 = vld [vmem:[#allocation8 + $0x18] sm:$0xf]
    %v760 = vld [vmem:[#allocation8 + $0x1c] sm:$0xf]
    %v761 = vld [vmem:[#allocation8 + $0x20] sm:$0xf]
    %v762 = vld [vmem:[#allocation8 + $0x24] sm:$0xf]
    %v763 = vld [vmem:[#allocation8 + $0x28] sm:$0xf]
    %v764 = vld [vmem:[#allocation8 + $0x2c] sm:$0xf]
    %v765 = vld [vmem:[#allocation8 + $0x30] sm:$0xf]
    %v766 = vld [vmem:[#allocation8 + $0x34] sm:$0xf]
    %v767 = vld [vmem:[#allocation8 + $0x38] sm:$0xf]
    %v768 = vld [vmem:[#allocation8 + $0x3c] sm:$0xf]
    %v769 = vld [vmem:[#allocation8 + $0x40] sm:$0xf]
    %v770 = vld [vmem:[#allocation8 + $0x44] sm:$0xf]
    %v771 = vld [vmem:[#allocation8 + $0x48] sm:$0xf]
    %v772 = vld [vmem:[#allocation8 + $0x4c] sm:$0xf]
    %v773 = vld [vmem:[#allocation8 + $0x50] sm:$0xf]
    %v774 = vld [vmem:[#allocation8 + $0x54] sm:$0xf]
    %v775 = vld [vmem:[#allocation8 + $0x58] sm:$0xf]
    %v776 = vld [vmem:[#allocation8 + $0x5c] sm:$0xf]
    %v777 = vld [vmem:[#allocation8 + $0x60] sm:$0xf]
    %v778 = vld [vmem:[#allocation8 + $0x64] sm:$0xf]
    %v779 = vld [vmem:[#allocation8 + $0x68] sm:$0xf]
    %v780 = vld [vmem:[#allocation8 + $0x6c] sm:$0xf]
    %v781 = vld [vmem:[#allocation8 + $0x70] sm:$0xf]
    %v782 = vld [vmem:[#allocation8 + $0x74] sm:$0xf]
    %v783 = vld [vmem:[#allocation8 + $0x78] sm:$0xf]
    %v784 = vld [vmem:[#allocation8 + $0x7c] sm:$0xf]
    %v785 = vld [vmem:[#allocation8 + $0x80] sm:$0xf]
    %v786 = vld [vmem:[#allocation8 + $0x84] sm:$0xf]
    %v787 = vld [vmem:[#allocation8 + $0x88] sm:$0xf]
    %v788 = vld [vmem:[#allocation8 + $0x8c] sm:$0xf]
    %v789 = vld [vmem:[#allocation8 + $0x90] sm:$0xf]
    %v790 = vld [vmem:[#allocation8 + $0x94] sm:$0xf]
    %v791 = vld [vmem:[#allocation8 + $0x98] sm:$0xf]
    %v792 = vld [vmem:[#allocation8 + $0x9c] sm:$0xf]
    %v793 = vld [vmem:[#allocation8 + $0xa0] sm:$0xf]
    %v794 = vld [vmem:[#allocation8 + $0xa4] sm:$0xf]
    %v795 = vld [vmem:[#allocation8 + $0xa8] sm:$0xf]
    %v796 = vld [vmem:[#allocation8 + $0xac] sm:$0xf]
    %v797 = vld [vmem:[#allocation8 + $0xb0] sm:$0xf]
    %v798 = vld [vmem:[#allocation8 + $0xb4] sm:$0xf]
    %v799 = vld [vmem:[#allocation8 + $0xb8] sm:$0xf]
    %v800 = vld [vmem:[#allocation8 + $0xbc] sm:$0xf]
    %v801 = vld [vmem:[#allocation8 + $0xc0] sm:$0xf]
    %v802 = vld [vmem:[#allocation8 + $0xc4] sm:$0xf]
    %v803 = vld [vmem:[#allocation8 + $0xc8] sm:$0xf]
    %v804 = vld [vmem:[#allocation8 + $0xcc] sm:$0xf]
    %v805 = vld [vmem:[#allocation8 + $0xd0] sm:$0xf]
    %v806 = vld [vmem:[#allocation8 + $0xd4] sm:$0xf]
    %v807 = vld [vmem:[#allocation8 + $0xd8] sm:$0xf]
    %v808 = vld [vmem:[#allocation8 + $0xdc] sm:$0xf]
    %v809 = vld [vmem:[#allocation8 + $0xe0] sm:$0xf]
    %v810 = vld [vmem:[#allocation8 + $0xe4] sm:$0xf]
    %v811 = vld [vmem:[#allocation8 + $0xe8] sm:$0xf]
    %v812 = vld [vmem:[#allocation8 + $0xec] sm:$0xf]
    %v813 = vld [vmem:[#allocation8 + $0xf0] sm:$0xf]
    %v814 = vld [vmem:[#allocation8 + $0xf4] sm:$0xf]
    %v815 = vld [vmem:[#allocation8 + $0xf8] sm:$0xf]
    %v816 = vld [vmem:[#allocation8 + $0xfc] sm:$0xf]
    %v881 = vunpack.c.l.b16 %v753
    %v882 = vunpack.c.l.b16 %v754
    %v883 = vunpack.c.l.b16 %v755
    %v884 = vunpack.c.l.b16 %v756
    %v885 = vunpack.c.l.b16 %v757
    %v886 = vunpack.c.l.b16 %v758
    %v887 = vunpack.c.l.b16 %v759
    %v888 = vunpack.c.l.b16 %v760
    %v889 = vunpack.c.l.b16 %v761
    %v890 = vunpack.c.l.b16 %v762
    %v891 = vunpack.c.l.b16 %v763
    %v892 = vunpack.c.l.b16 %v764
    %v893 = vunpack.c.l.b16 %v765
    %v894 = vunpack.c.l.b16 %v766
    %v895 = vunpack.c.l.b16 %v767
    %v896 = vunpack.c.l.b16 %v768
    %v897 = vunpack.c.l.b16 %v769
    %v898 = vunpack.c.l.b16 %v770
    %v899 = vunpack.c.l.b16 %v771
    %v900 = vunpack.c.l.b16 %v772
    %v901 = vunpack.c.l.b16 %v773
    %v902 = vunpack.c.l.b16 %v774
    %v903 = vunpack.c.l.b16 %v775
    %v904 = vunpack.c.l.b16 %v776
    %v905 = vunpack.c.l.b16 %v777
    %v906 = vunpack.c.l.b16 %v778
    %v907 = vunpack.c.l.b16 %v779
    %v908 = vunpack.c.l.b16 %v780
    %v909 = vunpack.c.l.b16 %v781
    %v910 = vunpack.c.l.b16 %v782
    %v911 = vunpack.c.l.b16 %v783
    %v912 = vunpack.c.l.b16 %v784
    %v913 = vunpack.c.l.b16 %v785
    %v914 = vunpack.c.l.b16 %v786
    %v915 = vunpack.c.l.b16 %v787
    %v916 = vunpack.c.l.b16 %v788
    %v917 = vunpack.c.l.b16 %v789
    %v918 = vunpack.c.l.b16 %v790
    %v919 = vunpack.c.l.b16 %v791
    %v920 = vunpack.c.l.b16 %v792
    %v921 = vunpack.c.l.b16 %v793
    %v922 = vunpack.c.l.b16 %v794
    %v923 = vunpack.c.l.b16 %v795
    %v924 = vunpack.c.l.b16 %v796
    %v925 = vunpack.c.l.b16 %v797
    %v926 = vunpack.c.l.b16 %v798
    %v927 = vunpack.c.l.b16 %v799
    %v928 = vunpack.c.l.b16 %v800
    %v929 = vunpack.c.l.b16 %v801
    %v930 = vunpack.c.l.b16 %v802
    %v931 = vunpack.c.l.b16 %v803
    %v932 = vunpack.c.l.b16 %v804
    %v933 = vunpack.c.l.b16 %v805
    %v934 = vunpack.c.l.b16 %v806
    %v935 = vunpack.c.l.b16 %v807
    %v936 = vunpack.c.l.b16 %v808
    %v937 = vunpack.c.l.b16 %v809
    %v938 = vunpack.c.l.b16 %v810
    %v939 = vunpack.c.l.b16 %v811
    %v940 = vunpack.c.l.b16 %v812
    %v941 = vunpack.c.l.b16 %v813
    %v942 = vunpack.c.l.b16 %v814
    %v943 = vunpack.c.l.b16 %v815
    %v944 = vunpack.c.l.b16 %v816
    %v945 = vpack.c.b16 %v882, %v881
    %v946 = vpack.c.b16 %v884, %v883
    %v947 = vpack.c.b16 %v886, %v885
    %v948 = vpack.c.b16 %v888, %v887
    %v949 = vpack.c.b16 %v890, %v889
    %v950 = vpack.c.b16 %v892, %v891
    %v951 = vpack.c.b16 %v894, %v893
    %v952 = vpack.c.b16 %v896, %v895
    %v953 = vpack.c.b16 %v898, %v897
    %v954 = vpack.c.b16 %v900, %v899
    %v955 = vpack.c.b16 %v902, %v901
    %v956 = vpack.c.b16 %v904, %v903
    %v957 = vpack.c.b16 %v906, %v905
    %v958 = vpack.c.b16 %v908, %v907
    %v959 = vpack.c.b16 %v910, %v909
    %v960 = vpack.c.b16 %v912, %v911
    %v961 = vpack.c.b16 %v914, %v913
    %v962 = vpack.c.b16 %v916, %v915
    %v963 = vpack.c.b16 %v918, %v917
    %v964 = vpack.c.b16 %v920, %v919
    %v965 = vpack.c.b16 %v922, %v921
    %v966 = vpack.c.b16 %v924, %v923
    %v967 = vpack.c.b16 %v926, %v925
    %v968 = vpack.c.b16 %v928, %v927
    %v969 = vpack.c.b16 %v930, %v929
    %v970 = vpack.c.b16 %v932, %v931
    %v971 = vpack.c.b16 %v934, %v933
    %v972 = vpack.c.b16 %v936, %v935
    %v973 = vpack.c.b16 %v938, %v937
    %v974 = vpack.c.b16 %v940, %v939
    %v975 = vpack.c.b16 %v942, %v941
    %v976 = vpack.c.b16 %v944, %v943
    %1009 = vmatprep.subr.bf16.mxu0 0
    %1010 = vmatpush1.bf16.msra.mxu0 %v952
    %1011 = vmatprep.subr.bf16.mxu0 0
    %1012 = vmatpush1.bf16.msra.mxu0 %v951
    %1013 = vmatprep.subr.bf16.mxu0 0
    %1014 = vmatpush1.bf16.msra.mxu0 %v950
    %1015 = vmatprep.subr.bf16.mxu0 0
    %1016 = vmatpush1.bf16.msra.mxu0 %v949
    %1017 = vmatprep.subr.bf16.mxu0 0
    %1018 = vmatpush1.bf16.msra.mxu0 %v948
    %1019 = vmatprep.subr.bf16.mxu0 0
    %1020 = vmatpush1.bf16.msra.mxu0 %v947
    %1021 = vmatprep.subr.bf16.mxu0 0
    %1022 = vmatpush1.bf16.msra.mxu0 %v946
    %1023 = vmatprep.subr.bf16.mxu0 0
    %1024 = vmatpush1.bf16.msra.mxu0 %v945
    %1025 = vmatprep.subr.bf16.mxu0 0
    %1026 = vmatpush2.bf16.msra.mxu0 %v960
    %1027 = vmatprep.subr.bf16.mxu0 0
    %1028 = vmatpush2.bf16.msra.mxu0 %v959
    %1029 = vmatprep.subr.bf16.mxu0 0
    %1030 = vmatpush2.bf16.msra.mxu0 %v958
    %1031 = vmatprep.subr.bf16.mxu0 0
    %1032 = vmatpush2.bf16.msra.mxu0 %v957
    %1033 = vmatprep.subr.bf16.mxu0 0
    %1034 = vmatpush2.bf16.msra.mxu0 %v956
    %1035 = vmatprep.subr.bf16.mxu0 0
    %1036 = vmatpush2.bf16.msra.mxu0 %v955
    %1037 = vmatprep.subr.bf16.mxu0 0
    %1038 = vmatpush2.bf16.msra.mxu0 %v954
    %1039 = vmatprep.subr.bf16.mxu0 0
    %1040 = vmatpush2.bf16.msra.mxu0 %v953
    %1041 = vmatprep.mubr.bf16.mxu0 %v750
    %1042 = vmatmul.mubr.bf16.gmra.mxu0 %v749
    %v1043 = vpop.f32.mrf.mxu0
    %v1044 = vadd.f32 0.0, %v1043
    %v1045 = vpop.f32.mrf.mxu0
    %v1046 = vpop.f32.mrf.mxu0
    %v1047 = vadd.f32 0.0, %v1046
    %v1048 = vpop.f32.mrf.mxu0
    %1049 = vdwg.mxu0
    %1050 = vmatprep.subr.bf16.mxu0 0
    %1051 = vmatpush1.bf16.msra.mxu0 %v968
    %1052 = vmatprep.subr.bf16.mxu0 0
    %1053 = vmatpush1.bf16.msra.mxu0 %v967
    %1054 = vmatprep.subr.bf16.mxu0 0
    %1055 = vmatpush1.bf16.msra.mxu0 %v966
    %1056 = vmatprep.subr.bf16.mxu0 0
    %1057 = vmatpush1.bf16.msra.mxu0 %v965
    %1058 = vmatprep.subr.bf16.mxu0 0
    %1059 = vmatpush1.bf16.msra.mxu0 %v964
    %1060 = vmatprep.subr.bf16.mxu0 0
    %1061 = vmatpush1.bf16.msra.mxu0 %v963
    %1062 = vmatprep.subr.bf16.mxu0 0
    %1063 = vmatpush1.bf16.msra.mxu0 %v962
    %1064 = vmatprep.subr.bf16.mxu0 0
    %1065 = vmatpush1.bf16.msra.mxu0 %v961
    %1066 = vmatprep.subr.bf16.mxu0 0
    %1067 = vmatpush2.bf16.msra.mxu0 %v976
    %1068 = vmatprep.subr.bf16.mxu0 0
    %1069 = vmatpush2.bf16.msra.mxu0 %v975
    %1070 = vmatprep.subr.bf16.mxu0 0
    %1071 = vmatpush2.bf16.msra.mxu0 %v974
    %1072 = vmatprep.subr.bf16.mxu0 0
    %1073 = vmatpush2.bf16.msra.mxu0 %v973
    %1074 = vmatprep.subr.bf16.mxu0 0
    %1075 = vmatpush2.bf16.msra.mxu0 %v972
    %1076 = vmatprep.subr.bf16.mxu0 0
    %1077 = vmatpush2.bf16.msra.mxu0 %v971
    %1078 = vmatprep.subr.bf16.mxu0 0
    %1079 = vmatpush2.bf16.msra.mxu0 %v970
    %1080 = vmatprep.subr.bf16.mxu0 0
    %1081 = vmatpush2.bf16.msra.mxu0 %v969
    %1082 = vmatprep.mubr.bf16.mxu0 %v752
    %1083 = vmatmul.mubr.bf16.gmra.mxu0 %v751
    %v1084 = vpop.f32.mrf.mxu0
    %v1085 = vadd.f32 %v1044, %v1084
    %v1086 = vpop.f32.mrf.mxu0
    %v1087 = vpop.f32.mrf.mxu0
    %v1088 = vadd.f32 %v1047, %v1087
    %v1089 = vpop.f32.mrf.mxu0
    %1090 = vdwg.mxu0
    %v1091 = vadd.f32 %v747, %v1085
    %v1092 = vadd.f32 %v748, %v1088
    %1093 = vst [vmem:[#allocation10] sm:$0xff] %v1091
    %1094 = vst [vmem:[#allocation10 + $0x8] sm:$0xff] %v1092
    // Predicated region
    $region38: #{tpu_custom_call.1} parent=1 // pred_check
      %p1095 = pneg %p72
    $region39: #{tpu_custom_call.1} parent=1 // pred_check_branch
      %1097 = sbr.rel (%p1095) target = $region41
    $region40: #{tpu_custom_call.1} parent=1 // pred_region
      %v1098 = vld [vmem:[#allocation10] sm:$0xff]
      %v1099 = vld [vmem:[#allocation10 + $0x8] sm:$0xff]
      %v1100 = vmul.f32 %v1098, %v1098
      %v1101 = vmul.f32 %v1099, %v1099
      %1102 = vadd.xlane.f32.xlu0 %v1100
      %v1103 = vpop.xlane.xlu0 %1102
      %1104 = vadd.xlane.f32.xlu0 %v1101
      %v1105 = vpop.xlane.xlu0 %1104
      %v1106 = vmax.f32 %v1103, 1e-24
      %v1107 = vmax.f32 %v1105, 1e-24
      %v1108 = vrsqrt.pop %v1106
      %v1109 = vrsqrt.pop %v1107
      %v1110 = vmul.f32 %v1098, %v1108
      %v1111 = vmul.f32 %v1099, %v1109
      %1112 = vst [vmem:[#allocation10] sm:$0xff] %v1110
      %1113 = vst [vmem:[#allocation10 + $0x8] sm:$0xff] %v1111
    $region41: #{tpu_custom_call.1} parent=1 // pred_fallthru
      _
    // Predicated region
    $region42: #{tpu_custom_call.1} parent=1 // pred_check
      _
    $region43: #{tpu_custom_call.1} parent=1 // pred_check_branch
      %1115 = sbr.rel (0) target = $region45
    $region44: #{tpu_custom_call.1} parent=1 // pred_region
      %s1117 = ssub.s32 256, 256
      %1118 = vsyncadd [#allocation4], %s1117
      %s1119 = sshll.u32 [#allocation10], 4
      %s1120 = int_to_ptr.vmem [resolvable:$true] %s1119
      %1125 = dma.vmem_to_hbm [thread:$0]  %s1120, 256, %s4, [#allocation4], 128, 128, 8
    $region45: #{tpu_custom_call.1} parent=1 // pred_fallthru
      _
    // Predicated region
    $region46: #{tpu_custom_call.1} parent=1 // pred_check
      _
    $region47: #{tpu_custom_call.1} parent=1 // pred_check_branch
      %1127 = sbr.rel (0) target = $region49
    $region48: #{tpu_custom_call.1} parent=1 // pred_region
      %1128 = dma.done [#allocation4], 256
    $region49: #{tpu_custom_call.1} parent=1 // pred_fallthru
      _
    %1129 = vsyncpa [#allocation3], 1
    %1130 = vsyncpa [#allocation6], 1
    %1131 = vsyncpa [#allocation9], 1
    %1132 = vsyncpa [#allocation4], 1

</llo_original>
